<compile_context>
chip_gen: v6e
topology: v6e:2x2x1
jax: 0.10.0
libtpu: 0.0.40
codegen_flags: <defaults>
</compile_context>

<pallas_src>
import time

import jax
import jax.numpy as jnp
from jax.experimental import pallas as pl
from jax.experimental.pallas import tpu as pltpu

# ---- logical problem sizes (small, consistent with an image classifier) -----
B, C, H, W = 2, 4, 16, 16          # batch, channels, spatial  -> NCHW input
D = C * H * W                      # 1024 flattened features
HID = 32                           # hidden width
OUT = 8                            # output width
_INV_N = 1.0 / (B * OUT)           # mean normalizer, folded into the kernel

_VMEM = pl.BlockSpec(memory_space=pltpu.MemorySpace.VMEM)


# -----------------------------------------------------------------------------
# Kernel: inner model forward + full MSE reduction (one pallas_call, no grid)
# -----------------------------------------------------------------------------
def _mlp_loss_kernel(x_ref, w1_ref, b1_ref, w2_ref, b2_ref, y_ref, loss_ref):
    """Fused MLP forward + MSE loss.

    All operands are passed at their natural (unpadded) shapes; Mosaic
    lane/sublane-pads them in VMEM, so no masking is needed and the result is
    exactly the unpadded model's MSE.
    """
    x = x_ref[...]                                                    # (B, D)
    h = jnp.maximum(
        jnp.dot(x, w1_ref[...], preferred_element_type=jnp.float32)
        + b1_ref[...], 0.0)                                           # (B, HID)
    logits = jnp.dot(h, w2_ref[...],
                     preferred_element_type=jnp.float32) + b2_ref[...]  # (B, OUT)
    diff = logits - y_ref[...]
    # Full reduction + mean scaling done in-kernel -> single (1,1) output.
    loss_ref[...] = jnp.sum(diff * diff, keepdims=True) * _INV_N


def _forward_loss(x_nchw, y, w1, b1, w2, b2):
    """Inner `model(**inputs)`: returns the (1,1) f32 MSE loss on device."""
    xf = x_nchw.reshape(x_nchw.shape[0], -1)        # row-major, like .view(B,-1)
    return pl.pallas_call(
        _mlp_loss_kernel,
        out_shape=jax.ShapeDtypeStruct((1, 1), jnp.float32),
        in_specs=[_VMEM] * 6,
        out_specs=_VMEM,
    )(xf, w1, b1, w2, b2, y)


_forward_loss_jit = jax.jit(_forward_loss)


# -----------------------------------------------------------------------------
# TimedForwardModel wrapper (mirrors the PyTorch module semantics)
# -----------------------------------------------------------------------------
class TimedForwardModelPallas:
    def __init__(self, model_fn, inference_weight=1.0, target_time=0.1):
        self.model_fn = model_fn
        self.inference_weight = float(inference_weight)
        self.target_time = float(target_time)
        self.last_time_loss = None

    def warmup(self, **inputs):
        """Trace + Mosaic compile + execute once so the timed call is steady-state."""
        jax.block_until_ready(self.model_fn(**inputs))

    def forward(self, **inputs):
        # TODO(synk): time.perf_counter() is host wall-clock (same as the
        # PyTorch original); it cannot be traced/measured inside the kernel.
        start_time = time.perf_counter()
        original_loss = jax.block_until_ready(self.model_fn(**inputs))
        forward_time = time.perf_counter() - start_time

        # F.smooth_l1_loss(forward_time, target_time) with default beta=1.0.
        # Both operands are host scalars -> plain host math, identical result,
        # no extra device op or host<->device sync.
        d = forward_time - self.target_time
        penalty = 0.5 * d * d if abs(d) < 1.0 else abs(d) - 0.5
        self.last_time_loss = penalty                      # == .item()

        # original_loss is already synced; combine on host (no scalar-add
        # kernel launch, no transfers). Semantics identical to the PyTorch add.
        total_loss = original_loss.item() + self.inference_weight * penalty
        # PyTorch returns the inner outputs with .loss replaced by total_loss;
        # we return (total_loss, original_loss) as the equivalent tuple.
        return total_loss, original_loss


# -----------------------------------------------------------------------------
# main
# -----------------------------------------------------------------------------
def _init_params(key):
    k1, k2, k3, k4 = jax.random.split(key, 4)
    w1 = jax.random.normal(k1, (D, HID), jnp.float32) * 0.02
    b1 = jax.random.normal(k2, (1, HID), jnp.float32) * 0.01
    w2 = jax.random.normal(k3, (HID, OUT), jnp.float32) * 0.02
    b2 = jax.random.normal(k4, (1, OUT), jnp.float32) * 0.01
    return w1, b1, w2, b2


if __name__ == "__main__":
    key = jax.random.PRNGKey(0)
    kx, ky, kp = jax.random.split(key, 3)

    x = jax.random.normal(kx, (B, C, H, W), jnp.float32)   # NCHW, like PyTorch
    y = jax.random.normal(ky, (B, OUT), jnp.float32)       # regression targets
    params = tuple(jax.block_until_ready(p) for p in _init_params(kp))

    def model_fn(x, y):
        return _forward_loss_jit(x, y, *params)

    timed_model = TimedForwardModelPallas(
        model_fn, inference_weight=0.1, target_time=0.001)

    # Warm up (trace + Mosaic compile + first dispatch) so the timed forward
    # measures steady-state inference, not compilation -- matching PyTorch.
    timed_model.warmup(x=x, y=y)

    total_loss, original_loss = timed_model.forward(x=x, y=y)
    original_loss = jax.block_until_ready(original_loss)
    orig = float(original_loss[0, 0])

    # Pure-JAX reference for the inner model's MSE loss (f32, highest matmul
    # precision to match the kernel's f32 MXU accumulation).
    w1, b1, w2, b2 = params
    hp = jax.lax.Precision.HIGHEST
    xf = x.reshape(B, -1)
    ref_h = jnp.maximum(jnp.dot(xf, w1, precision=hp) + b1, 0.0)
    ref_logits = jnp.dot(ref_h, w2, precision=hp) + b2
    ref_loss = float(jnp.mean((ref_logits - y) ** 2))

    assert timed_model.last_time_loss is not None
    assert jnp.isfinite(total_loss)
    assert abs(orig - ref_loss) < 1e-4, (orig, ref_loss)
    expected_total = ref_loss + 0.1 * timed_model.last_time_loss
    assert abs(float(total_loss) - expected_total) < 1e-4

    print("KERNEL_OK")
</pallas_src>

<mosaic_0001>
module attributes {stable_mosaic.version = 11 : i64} {
  func.func @_mlp_loss_kernel(%arg0: memref<2x1024xf32, #tpu.memory_space<vmem>>, %arg1: memref<1024x32xf32, #tpu.memory_space<vmem>>, %arg2: memref<1x32xf32, #tpu.memory_space<vmem>>, %arg3: memref<32x8xf32, #tpu.memory_space<vmem>>, %arg4: memref<1x8xf32, #tpu.memory_space<vmem>>, %arg5: memref<2x8xf32, #tpu.memory_space<vmem>>, %arg6: memref<1x1xf32, #tpu.memory_space<vmem>>) attributes {dimension_semantics = [], scalar_prefetch = 0 : i64, scratch_operands = 0 : i64, tpu.core_type = #tpu.core_type<tc>} {
    %c0 = arith.constant 0 : index
    %c0_0 = arith.constant 0 : index
    %0 = vector.load %arg0[%c0, %c0_0] : memref<2x1024xf32, #tpu.memory_space<vmem>>, vector<2x1024xf32>
    %c0_1 = arith.constant 0 : index
    %c0_2 = arith.constant 0 : index
    %1 = vector.load %arg1[%c0_1, %c0_2] : memref<1024x32xf32, #tpu.memory_space<vmem>>, vector<1024x32xf32>
    %cst = arith.constant dense<0.000000e+00> : vector<2x32xf32>
    %2 = tpu.matmul %0, %1, %cst {dimension_numbers = #tpu.dot_dimension_numbers<[1], [0], [0], [1], [0, 0, 1, 1], [], []>} : vector<2x1024xf32>, vector<1024x32xf32>, vector<2x32xf32> -> vector<2x32xf32>
    %c0_3 = arith.constant 0 : index
    %c0_4 = arith.constant 0 : index
    %3 = vector.load %arg2[%c0_3, %c0_4] : memref<1x32xf32, #tpu.memory_space<vmem>>, vector<1x32xf32>
    %4 = vector.broadcast %3 : vector<1x32xf32> to vector<2x32xf32>
    %5 = arith.addf %2, %4 : vector<2x32xf32>
    %cst_5 = arith.constant 0.000000e+00 : f32
    %6 = vector.broadcast %cst_5 : f32 to vector<2x32xf32>
    %7 = arith.maximumf %5, %6 : vector<2x32xf32>
    %c0_6 = arith.constant 0 : index
    %c0_7 = arith.constant 0 : index
    %8 = vector.load %arg3[%c0_6, %c0_7] : memref<32x8xf32, #tpu.memory_space<vmem>>, vector<32x8xf32>
    %cst_8 = arith.constant dense<0.000000e+00> : vector<2x8xf32>
    %9 = tpu.matmul %7, %8, %cst_8 {dimension_numbers = #tpu.dot_dimension_numbers<[1], [0], [0], [1], [0, 0, 1, 1], [], []>} : vector<2x32xf32>, vector<32x8xf32>, vector<2x8xf32> -> vector<2x8xf32>
    %c0_9 = arith.constant 0 : index
    %c0_10 = arith.constant 0 : index
    %10 = vector.load %arg4[%c0_9, %c0_10] : memref<1x8xf32, #tpu.memory_space<vmem>>, vector<1x8xf32>
    %11 = vector.broadcast %10 : vector<1x8xf32> to vector<2x8xf32>
    %12 = arith.addf %9, %11 : vector<2x8xf32>
    %c0_11 = arith.constant 0 : index
    %c0_12 = arith.constant 0 : index
    %13 = vector.load %arg5[%c0_11, %c0_12] : memref<2x8xf32, #tpu.memory_space<vmem>>, vector<2x8xf32>
    %14 = arith.subf %12, %13 : vector<2x8xf32>
    %15 = arith.mulf %14, %14 : vector<2x8xf32>
    %16 = vector.shape_cast %15 : vector<2x8xf32> to vector<1x2x8xf32>
    %cst_13 = arith.constant dense<0.000000e+00> : vector<1xf32>
    %17 = vector.multi_reduction <add>, %16, %cst_13 [1, 2] : vector<1x2x8xf32> to vector<1xf32>
    %18 = vector.shape_cast %17 : vector<1xf32> to vector<1x1x1xf32>
    %19 = vector.extract %18[0, 0, 0] : f32 from vector<1x1x1xf32>
    %20 = vector.broadcast %19 : f32 to vector<1x1xf32>
    %cst_14 = arith.constant 6.250000e-02 : f32
    %21 = vector.broadcast %cst_14 : f32 to vector<1x1xf32>
    %22 = arith.mulf %20, %21 : vector<1x1xf32>
    %c0_15 = arith.constant 0 : index
    %c0_16 = arith.constant 0 : index
    %23 = vector.load %arg6[%c0_15, %c0_16] : memref<1x1xf32, #tpu.memory_space<vmem>>, vector<1x1xf32>
    tpu.vector_store %arg6[%c0_15, %c0_16], %22 {strides = array<i32>} : memref<1x1xf32, #tpu.memory_space<vmem>>, vector<1x1xf32>,
    return
  }
}

</mosaic_0001>

<llo_original>
// kernel: _forward_loss.1
$region0: #{_forward_loss.1}
  #allocation0 [shape = 'u32[]', space=smem, size = 0x4, offset = 0x4, fixed_abs, tag = 'smem constant byte address 0x4 - core index']
  #allocation1 [shape = 'u32[144,128]{1,0:T(1,128)}', space=vmem, size = 0x12000, scoped, tag = 'internal scratch']
  %s0 = inlined_call_operand.vmem [shape: f32[2,1024], index: 0, kind: input, shape index: {}]
  %s1 = inlined_call_operand.vmem [shape: f32[1024,32], index: 1, kind: input, shape index: {}]
  %s2 = inlined_call_operand.vmem [shape: f32[1,32], index: 2, kind: input, shape index: {}]
  %s3 = inlined_call_operand.vmem [shape: f32[32,8], index: 3, kind: input, shape index: {}]
  %s4 = inlined_call_operand.vmem [shape: f32[1,8], index: 4, kind: input, shape index: {}]
  %s5 = inlined_call_operand.vmem [shape: f32[2,8], index: 5, kind: input, shape index: {}]
  %s6 = inlined_call_operand.hbm [shape: f32[1,1], index: 6, kind: output, shape index: {}]
  %s7 = sld [smem:[#allocation0]]
  $region34: #{_forward_loss.1} parent=0
    _
  %s9 = ssub.s32 1, %s7
  %s10 = scalar_select 0, %s9, %s7
  $region1: #{_forward_loss.1} parent=0
    #allocation2 [shape = 'u8[512]{0}', space=vmem, size = 0x400, scoped, tag = 'output window, operand 0, single buffered']
    #allocation3 [shape = 's32[1]{0}', space=sflag, size = 0x4, scoped, tag = 'scoped memory for _forward_loss.1']
    %11 = vsyncpa [#allocation3], 0
    // Predicated region
    $region2: #{_forward_loss.1} parent=1 // pred_check
      _
    $region3: #{_forward_loss.1} parent=1 // pred_check_branch
      %13 = sbr.rel (0) target = $region5
    $region4: #{_forward_loss.1} parent=1 // pred_region
      _
    $region5: #{_forward_loss.1} parent=1 // pred_fallthru
      _
    // Predicated region
    $region6: #{_forward_loss.1} parent=1 // pred_check
      _
    $region7: #{_forward_loss.1} parent=1 // pred_check_branch
      %15 = sbr.rel (0) target = $region9
    $region8: #{_forward_loss.1} parent=1 // pred_region
      _
    $region9: #{_forward_loss.1} parent=1 // pred_fallthru
      _
    // Predicated region
    $region10: #{_forward_loss.1} parent=1 // pred_check
      _
    $region11: #{_forward_loss.1} parent=1 // pred_check_branch
      %17 = sbr.rel (0) target = $region13
    $region12: #{_forward_loss.1} parent=1 // pred_region
      _
    $region13: #{_forward_loss.1} parent=1 // pred_fallthru
      _
    // Predicated region
    $region14: #{_forward_loss.1} parent=1 // pred_check
      _
    $region15: #{_forward_loss.1} parent=1 // pred_check_branch
      %19 = sbr.rel (0) target = $region17
    $region16: #{_forward_loss.1} parent=1 // pred_region
      _
    $region17: #{_forward_loss.1} parent=1 // pred_fallthru
      _
    // Predicated region
    $region18: #{_forward_loss.1} parent=1 // pred_check
      _
    $region19: #{_forward_loss.1} parent=1 // pred_check_branch
      %21 = sbr.rel (0) target = $region21
    $region20: #{_forward_loss.1} parent=1 // pred_region
      _
    $region21: #{_forward_loss.1} parent=1 // pred_fallthru
      _
    // Predicated region
    $region22: #{_forward_loss.1} parent=1 // pred_check
      _
    $region23: #{_forward_loss.1} parent=1 // pred_check_branch
      %23 = sbr.rel (0) target = $region25
    $region24: #{_forward_loss.1} parent=1 // pred_region
      _
    $region25: #{_forward_loss.1} parent=1 // pred_fallthru
      _
    %v24 = vld [vmem:[%s0] sm:$0xff]
    %v25 = vld [vmem:[%s0 + $0x8] sm:$0xff]
    %v26 = vld [vmem:[%s1] sm:$0xff]
    %v27 = vld [vmem:[%s1 + $0x8] sm:$0xff]
    %v28 = vld [vmem:[%s1 + $0x10] sm:$0xff]
    %v29 = vld [vmem:[%s1 + $0x18] sm:$0xff]
    %v30 = vld [vmem:[%s1 + $0x20] sm:$0xff]
    %v31 = vld [vmem:[%s1 + $0x28] sm:$0xff]
    %v32 = vld [vmem:[%s1 + $0x30] sm:$0xff]
    %v33 = vld [vmem:[%s1 + $0x38] sm:$0xff]
    %v34 = vld [vmem:[%s1 + $0x40] sm:$0xff]
    %v35 = vld [vmem:[%s1 + $0x48] sm:$0xff]
    %v36 = vld [vmem:[%s1 + $0x50] sm:$0xff]
    %v37 = vld [vmem:[%s1 + $0x58] sm:$0xff]
    %v38 = vld [vmem:[%s1 + $0x60] sm:$0xff]
    %v39 = vld [vmem:[%s1 + $0x68] sm:$0xff]
    %v40 = vld [vmem:[%s1 + $0x70] sm:$0xff]
    %v41 = vld [vmem:[%s1 + $0x78] sm:$0xff]
    %v42 = vld [vmem:[%s1 + $0x80] sm:$0xff]
    %v43 = vld [vmem:[%s1 + $0x88] sm:$0xff]
    %v44 = vld [vmem:[%s1 + $0x90] sm:$0xff]
    %v45 = vld [vmem:[%s1 + $0x98] sm:$0xff]
    %v46 = vld [vmem:[%s1 + $0xa0] sm:$0xff]
    %v47 = vld [vmem:[%s1 + $0xa8] sm:$0xff]
    %v48 = vld [vmem:[%s1 + $0xb0] sm:$0xff]
    %v49 = vld [vmem:[%s1 + $0xb8] sm:$0xff]
    %v50 = vld [vmem:[%s1 + $0xc0] sm:$0xff]
    %v51 = vld [vmem:[%s1 + $0xc8] sm:$0xff]
    %v52 = vld [vmem:[%s1 + $0xd0] sm:$0xff]
    %v53 = vld [vmem:[%s1 + $0xd8] sm:$0xff]
    %v54 = vld [vmem:[%s1 + $0xe0] sm:$0xff]
    %v55 = vld [vmem:[%s1 + $0xe8] sm:$0xff]
    %v56 = vld [vmem:[%s1 + $0xf0] sm:$0xff]
    %v57 = vld [vmem:[%s1 + $0xf8] sm:$0xff]
    %v58 = vld [vmem:[%s1 + $0x100] sm:$0xff]
    %v59 = vld [vmem:[%s1 + $0x108] sm:$0xff]
    %v60 = vld [vmem:[%s1 + $0x110] sm:$0xff]
    %v61 = vld [vmem:[%s1 + $0x118] sm:$0xff]
    %v62 = vld [vmem:[%s1 + $0x120] sm:$0xff]
    %v63 = vld [vmem:[%s1 + $0x128] sm:$0xff]
    %v64 = vld [vmem:[%s1 + $0x130] sm:$0xff]
    %v65 = vld [vmem:[%s1 + $0x138] sm:$0xff]
    %v66 = vld [vmem:[%s1 + $0x140] sm:$0xff]
    %v67 = vld [vmem:[%s1 + $0x148] sm:$0xff]
    %v68 = vld [vmem:[%s1 + $0x150] sm:$0xff]
    %v69 = vld [vmem:[%s1 + $0x158] sm:$0xff]
    %v70 = vld [vmem:[%s1 + $0x160] sm:$0xff]
    %v71 = vld [vmem:[%s1 + $0x168] sm:$0xff]
    %v72 = vld [vmem:[%s1 + $0x170] sm:$0xff]
    %v73 = vld [vmem:[%s1 + $0x178] sm:$0xff]
    %v74 = vld [vmem:[%s1 + $0x180] sm:$0xff]
    %v75 = vld [vmem:[%s1 + $0x188] sm:$0xff]
    %v76 = vld [vmem:[%s1 + $0x190] sm:$0xff]
    %v77 = vld [vmem:[%s1 + $0x198] sm:$0xff]
    %v78 = vld [vmem:[%s1 + $0x1a0] sm:$0xff]
    %v79 = vld [vmem:[%s1 + $0x1a8] sm:$0xff]
    %v80 = vld [vmem:[%s1 + $0x1b0] sm:$0xff]
    %v81 = vld [vmem:[%s1 + $0x1b8] sm:$0xff]
    %v82 = vld [vmem:[%s1 + $0x1c0] sm:$0xff]
    %v83 = vld [vmem:[%s1 + $0x1c8] sm:$0xff]
    %v84 = vld [vmem:[%s1 + $0x1d0] sm:$0xff]
    %v85 = vld [vmem:[%s1 + $0x1d8] sm:$0xff]
    %v86 = vld [vmem:[%s1 + $0x1e0] sm:$0xff]
    %v87 = vld [vmem:[%s1 + $0x1e8] sm:$0xff]
    %v88 = vld [vmem:[%s1 + $0x1f0] sm:$0xff]
    %v89 = vld [vmem:[%s1 + $0x1f8] sm:$0xff]
    %v90 = vld [vmem:[%s1 + $0x200] sm:$0xff]
    %v91 = vld [vmem:[%s1 + $0x208] sm:$0xff]
    %v92 = vld [vmem:[%s1 + $0x210] sm:$0xff]
    %v93 = vld [vmem:[%s1 + $0x218] sm:$0xff]
    %v94 = vld [vmem:[%s1 + $0x220] sm:$0xff]
    %v95 = vld [vmem:[%s1 + $0x228] sm:$0xff]
    %v96 = vld [vmem:[%s1 + $0x230] sm:$0xff]
    %v97 = vld [vmem:[%s1 + $0x238] sm:$0xff]
    %v98 = vld [vmem:[%s1 + $0x240] sm:$0xff]
    %v99 = vld [vmem:[%s1 + $0x248] sm:$0xff]
    %v100 = vld [vmem:[%s1 + $0x250] sm:$0xff]
    %v101 = vld [vmem:[%s1 + $0x258] sm:$0xff]
    %v102 = vld [vmem:[%s1 + $0x260] sm:$0xff]
    %v103 = vld [vmem:[%s1 + $0x268] sm:$0xff]
    %v104 = vld [vmem:[%s1 + $0x270] sm:$0xff]
    %v105 = vld [vmem:[%s1 + $0x278] sm:$0xff]
    %v106 = vld [vmem:[%s1 + $0x280] sm:$0xff]
    %v107 = vld [vmem:[%s1 + $0x288] sm:$0xff]
    %v108 = vld [vmem:[%s1 + $0x290] sm:$0xff]
    %v109 = vld [vmem:[%s1 + $0x298] sm:$0xff]
    %v110 = vld [vmem:[%s1 + $0x2a0] sm:$0xff]
    %v111 = vld [vmem:[%s1 + $0x2a8] sm:$0xff]
    %v112 = vld [vmem:[%s1 + $0x2b0] sm:$0xff]
    %v113 = vld [vmem:[%s1 + $0x2b8] sm:$0xff]
    %v114 = vld [vmem:[%s1 + $0x2c0] sm:$0xff]
    %v115 = vld [vmem:[%s1 + $0x2c8] sm:$0xff]
    %v116 = vld [vmem:[%s1 + $0x2d0] sm:$0xff]
    %v117 = vld [vmem:[%s1 + $0x2d8] sm:$0xff]
    %v118 = vld [vmem:[%s1 + $0x2e0] sm:$0xff]
    %v119 = vld [vmem:[%s1 + $0x2e8] sm:$0xff]
    %v120 = vld [vmem:[%s1 + $0x2f0] sm:$0xff]
    %v121 = vld [vmem:[%s1 + $0x2f8] sm:$0xff]
    %v122 = vld [vmem:[%s1 + $0x300] sm:$0xff]
    %v123 = vld [vmem:[%s1 + $0x308] sm:$0xff]
    %v124 = vld [vmem:[%s1 + $0x310] sm:$0xff]
    %v125 = vld [vmem:[%s1 + $0x318] sm:$0xff]
    %v126 = vld [vmem:[%s1 + $0x320] sm:$0xff]
    %v127 = vld [vmem:[%s1 + $0x328] sm:$0xff]
    %v128 = vld [vmem:[%s1 + $0x330] sm:$0xff]
    %v129 = vld [vmem:[%s1 + $0x338] sm:$0xff]
    %v130 = vld [vmem:[%s1 + $0x340] sm:$0xff]
    %v131 = vld [vmem:[%s1 + $0x348] sm:$0xff]
    %v132 = vld [vmem:[%s1 + $0x350] sm:$0xff]
    %v133 = vld [vmem:[%s1 + $0x358] sm:$0xff]
    %v134 = vld [vmem:[%s1 + $0x360] sm:$0xff]
    %v135 = vld [vmem:[%s1 + $0x368] sm:$0xff]
    %v136 = vld [vmem:[%s1 + $0x370] sm:$0xff]
    %v137 = vld [vmem:[%s1 + $0x378] sm:$0xff]
    %v138 = vld [vmem:[%s1 + $0x380] sm:$0xff]
    %v139 = vld [vmem:[%s1 + $0x388] sm:$0xff]
    %v140 = vld [vmem:[%s1 + $0x390] sm:$0xff]
    %v141 = vld [vmem:[%s1 + $0x398] sm:$0xff]
    %v142 = vld [vmem:[%s1 + $0x3a0] sm:$0xff]
    %v143 = vld [vmem:[%s1 + $0x3a8] sm:$0xff]
    %v144 = vld [vmem:[%s1 + $0x3b0] sm:$0xff]
    %v145 = vld [vmem:[%s1 + $0x3b8] sm:$0xff]
    %v146 = vld [vmem:[%s1 + $0x3c0] sm:$0xff]
    %v147 = vld [vmem:[%s1 + $0x3c8] sm:$0xff]
    %v148 = vld [vmem:[%s1 + $0x3d0] sm:$0xff]
    %v149 = vld [vmem:[%s1 + $0x3d8] sm:$0xff]
    %v150 = vld [vmem:[%s1 + $0x3e0] sm:$0xff]
    %v151 = vld [vmem:[%s1 + $0x3e8] sm:$0xff]
    %v152 = vld [vmem:[%s1 + $0x3f0] sm:$0xff]
    %v153 = vld [vmem:[%s1 + $0x3f8] sm:$0xff]
    %v154 = vld [vmem:[%s2] sm:$0x1]
    %v156 = vlaneseq
    %v157 = vshrl.u32 %v156, 7
    %v158 = vsub.s32 0, %v157
    %v159 = vrot.slane %v154, %v158
    %v163 = vcombine.high %v24, %v24
    %v165 = vunpack.c.l.s4 1983009808
    %v166 = vunpack.c.0.s8 %v165
    %v167 = vlaneseq
    %v168 = vshrl.u32 %v167, 7
    %v169 = vsub.s32 %v166, %v168
    %v170 = vrot.slane %v24, %v169
    %v172 = vunpack.c.l.s4 1983009808
    %v173 = vunpack.c.0.s8 %v172
    %v174 = vlaneseq
    %v175 = vshrl.u32 %v174, 7
    %v176 = vsub.s32 %v173, %v175
    %v177 = vrot.slane %v163, %v176
    %v178 = vcombine.high %v170, %v170
    %v179 = vcombine.high %v177, %v177
    %v180 = vcombine.high %v25, %v25
    %v182 = vunpack.c.l.s4 1983009808
    %v183 = vunpack.c.0.s8 %v182
    %v184 = vlaneseq
    %v185 = vshrl.u32 %v184, 7
    %v186 = vsub.s32 %v183, %v185
    %v187 = vrot.slane %v25, %v186
    %v189 = vunpack.c.l.s4 1983009808
    %v190 = vunpack.c.0.s8 %v189
    %v191 = vlaneseq
    %v192 = vshrl.u32 %v191, 7
    %v193 = vsub.s32 %v190, %v192
    %v194 = vrot.slane %v180, %v193
    %v195 = vcombine.high %v187, %v187
    %v196 = vcombine.high %v194, %v194
    %205 = vmatprep.subr.mxu0 0.0
    %206 = vmatpush1.msra.mxu0 %v41
    %207 = vmatprep.subr.mxu0 0.0
    %208 = vmatpush1.msra.mxu0 %v40
    %209 = vmatprep.subr.mxu0 0.0
    %210 = vmatpush1.msra.mxu0 %v39
    %211 = vmatprep.subr.mxu0 0.0
    %212 = vmatpush1.msra.mxu0 %v38
    %213 = vmatprep.subr.mxu0 0.0
    %214 = vmatpush1.msra.mxu0 %v37
    %215 = vmatprep.subr.mxu0 0.0
    %216 = vmatpush1.msra.mxu0 %v36
    %217 = vmatprep.subr.mxu0 0.0
    %218 = vmatpush1.msra.mxu0 %v35
    %219 = vmatprep.subr.mxu0 0.0
    %220 = vmatpush1.msra.mxu0 %v34
    %221 = vmatprep.subr.mxu0 0.0
    %222 = vmatpush1.msra.mxu0 %v33
    %223 = vmatprep.subr.mxu0 0.0
    %224 = vmatpush1.msra.mxu0 %v32
    %225 = vmatprep.subr.mxu0 0.0
    %226 = vmatpush1.msra.mxu0 %v31
    %227 = vmatprep.subr.mxu0 0.0
    %228 = vmatpush1.msra.mxu0 %v30
    %229 = vmatprep.subr.mxu0 0.0
    %230 = vmatpush1.msra.mxu0 %v29
    %231 = vmatprep.subr.mxu0 0.0
    %232 = vmatpush1.msra.mxu0 %v28
    %233 = vmatprep.subr.mxu0 0.0
    %234 = vmatpush1.msra.mxu0 %v27
    %235 = vmatprep.subr.mxu0 0.0
    %236 = vmatpush1.msra.mxu0 %v26
    %237 = vmatprep.subr.mxu0 0.0
    %238 = vmatpush2.msra.mxu0 %v57
    %239 = vmatprep.subr.mxu0 0.0
    %240 = vmatpush2.msra.mxu0 %v56
    %241 = vmatprep.subr.mxu0 0.0
    %242 = vmatpush2.msra.mxu0 %v55
    %243 = vmatprep.subr.mxu0 0.0
    %244 = vmatpush2.msra.mxu0 %v54
    %245 = vmatprep.subr.mxu0 0.0
    %246 = vmatpush2.msra.mxu0 %v53
    %247 = vmatprep.subr.mxu0 0.0
    %248 = vmatpush2.msra.mxu0 %v52
    %249 = vmatprep.subr.mxu0 0.0
    %250 = vmatpush2.msra.mxu0 %v51
    %251 = vmatprep.subr.mxu0 0.0
    %252 = vmatpush2.msra.mxu0 %v50
    %253 = vmatprep.subr.mxu0 0.0
    %254 = vmatpush2.msra.mxu0 %v49
    %255 = vmatprep.subr.mxu0 0.0
    %256 = vmatpush2.msra.mxu0 %v48
    %257 = vmatprep.subr.mxu0 0.0
    %258 = vmatpush2.msra.mxu0 %v47
    %259 = vmatprep.subr.mxu0 0.0
    %260 = vmatpush2.msra.mxu0 %v46
    %261 = vmatprep.subr.mxu0 0.0
    %262 = vmatpush2.msra.mxu0 %v45
    %263 = vmatprep.subr.mxu0 0.0
    %264 = vmatpush2.msra.mxu0 %v44
    %265 = vmatprep.subr.mxu0 0.0
    %266 = vmatpush2.msra.mxu0 %v43
    %267 = vmatprep.subr.mxu0 0.0
    %268 = vmatpush2.msra.mxu0 %v42
    %269 = vmatprep.mubr.f32.mxu0 %v178
    %270 = vmatmul.mubr.f32.gmra.mxu0 %v170
    %v271 = vpop.f32.mrf.mxu0
    %v272 = vadd.f32 %v159, %v271
    %v273 = vpop.f32.mrf.mxu0
    %274 = vdwg.mxu0
    %275 = vmatprep.subr.mxu0 0.0
    %276 = vmatpush1.msra.mxu0 %v73
    %277 = vmatprep.subr.mxu0 0.0
    %278 = vmatpush1.msra.mxu0 %v72
    %279 = vmatprep.subr.mxu0 0.0
    %280 = vmatpush1.msra.mxu0 %v71
    %281 = vmatprep.subr.mxu0 0.0
    %282 = vmatpush1.msra.mxu0 %v70
    %283 = vmatprep.subr.mxu0 0.0
    %284 = vmatpush1.msra.mxu0 %v69
    %285 = vmatprep.subr.mxu0 0.0
    %286 = vmatpush1.msra.mxu0 %v68
    %287 = vmatprep.subr.mxu0 0.0
    %288 = vmatpush1.msra.mxu0 %v67
    %289 = vmatprep.subr.mxu0 0.0
    %290 = vmatpush1.msra.mxu0 %v66
    %291 = vmatprep.subr.mxu0 0.0
    %292 = vmatpush1.msra.mxu0 %v65
    %293 = vmatprep.subr.mxu0 0.0
    %294 = vmatpush1.msra.mxu0 %v64
    %295 = vmatprep.subr.mxu0 0.0
    %296 = vmatpush1.msra.mxu0 %v63
    %297 = vmatprep.subr.mxu0 0.0
    %298 = vmatpush1.msra.mxu0 %v62
    %299 = vmatprep.subr.mxu0 0.0
    %300 = vmatpush1.msra.mxu0 %v61
    %301 = vmatprep.subr.mxu0 0.0
    %302 = vmatpush1.msra.mxu0 %v60
    %303 = vmatprep.subr.mxu0 0.0
    %304 = vmatpush1.msra.mxu0 %v59
    %305 = vmatprep.subr.mxu0 0.0
    %306 = vmatpush1.msra.mxu0 %v58
    %307 = vmatprep.subr.mxu0 0.0
    %308 = vmatpush2.msra.mxu0 %v89
    %309 = vmatprep.subr.mxu0 0.0
    %310 = vmatpush2.msra.mxu0 %v88
    %311 = vmatprep.subr.mxu0 0.0
    %312 = vmatpush2.msra.mxu0 %v87
    %313 = vmatprep.subr.mxu0 0.0
    %314 = vmatpush2.msra.mxu0 %v86
    %315 = vmatprep.subr.mxu0 0.0
    %316 = vmatpush2.msra.mxu0 %v85
    %317 = vmatprep.subr.mxu0 0.0
    %318 = vmatpush2.msra.mxu0 %v84
    %319 = vmatprep.subr.mxu0 0.0
    %320 = vmatpush2.msra.mxu0 %v83
    %321 = vmatprep.subr.mxu0 0.0
    %322 = vmatpush2.msra.mxu0 %v82
    %323 = vmatprep.subr.mxu0 0.0
    %324 = vmatpush2.msra.mxu0 %v81
    %325 = vmatprep.subr.mxu0 0.0
    %326 = vmatpush2.msra.mxu0 %v80
    %327 = vmatprep.subr.mxu0 0.0
    %328 = vmatpush2.msra.mxu0 %v79
    %329 = vmatprep.subr.mxu0 0.0
    %330 = vmatpush2.msra.mxu0 %v78
    %331 = vmatprep.subr.mxu0 0.0
    %332 = vmatpush2.msra.mxu0 %v77
    %333 = vmatprep.subr.mxu0 0.0
    %334 = vmatpush2.msra.mxu0 %v76
    %335 = vmatprep.subr.mxu0 0.0
    %336 = vmatpush2.msra.mxu0 %v75
    %337 = vmatprep.subr.mxu0 0.0
    %338 = vmatpush2.msra.mxu0 %v74
    %339 = vmatprep.mubr.f32.mxu0 %v179
    %340 = vmatmul.mubr.f32.gmra.mxu0 %v177
    %v341 = vpop.f32.mrf.mxu0
    %v342 = vadd.f32 %v272, %v341
    %v343 = vpop.f32.mrf.mxu0
    %344 = vdwg.mxu0
    %345 = vmatprep.subr.mxu0 0.0
    %346 = vmatpush1.msra.mxu0 %v105
    %347 = vmatprep.subr.mxu0 0.0
    %348 = vmatpush1.msra.mxu0 %v104
    %349 = vmatprep.subr.mxu0 0.0
    %350 = vmatpush1.msra.mxu0 %v103
    %351 = vmatprep.subr.mxu0 0.0
    %352 = vmatpush1.msra.mxu0 %v102
    %353 = vmatprep.subr.mxu0 0.0
    %354 = vmatpush1.msra.mxu0 %v101
    %355 = vmatprep.subr.mxu0 0.0
    %356 = vmatpush1.msra.mxu0 %v100
    %357 = vmatprep.subr.mxu0 0.0
    %358 = vmatpush1.msra.mxu0 %v99
    %359 = vmatprep.subr.mxu0 0.0
    %360 = vmatpush1.msra.mxu0 %v98
    %361 = vmatprep.subr.mxu0 0.0
    %362 = vmatpush1.msra.mxu0 %v97
    %363 = vmatprep.subr.mxu0 0.0
    %364 = vmatpush1.msra.mxu0 %v96
    %365 = vmatprep.subr.mxu0 0.0
    %366 = vmatpush1.msra.mxu0 %v95
    %367 = vmatprep.subr.mxu0 0.0
    %368 = vmatpush1.msra.mxu0 %v94
    %369 = vmatprep.subr.mxu0 0.0
    %370 = vmatpush1.msra.mxu0 %v93
    %371 = vmatprep.subr.mxu0 0.0
    %372 = vmatpush1.msra.mxu0 %v92
    %373 = vmatprep.subr.mxu0 0.0
    %374 = vmatpush1.msra.mxu0 %v91
    %375 = vmatprep.subr.mxu0 0.0
    %376 = vmatpush1.msra.mxu0 %v90
    %377 = vmatprep.subr.mxu0 0.0
    %378 = vmatpush2.msra.mxu0 %v121
    %379 = vmatprep.subr.mxu0 0.0
    %380 = vmatpush2.msra.mxu0 %v120
    %381 = vmatprep.subr.mxu0 0.0
    %382 = vmatpush2.msra.mxu0 %v119
    %383 = vmatprep.subr.mxu0 0.0
    %384 = vmatpush2.msra.mxu0 %v118
    %385 = vmatprep.subr.mxu0 0.0
    %386 = vmatpush2.msra.mxu0 %v117
    %387 = vmatprep.subr.mxu0 0.0
    %388 = vmatpush2.msra.mxu0 %v116
    %389 = vmatprep.subr.mxu0 0.0
    %390 = vmatpush2.msra.mxu0 %v115
    %391 = vmatprep.subr.mxu0 0.0
    %392 = vmatpush2.msra.mxu0 %v114
    %393 = vmatprep.subr.mxu0 0.0
    %394 = vmatpush2.msra.mxu0 %v113
    %395 = vmatprep.subr.mxu0 0.0
    %396 = vmatpush2.msra.mxu0 %v112
    %397 = vmatprep.subr.mxu0 0.0
    %398 = vmatpush2.msra.mxu0 %v111
    %399 = vmatprep.subr.mxu0 0.0
    %400 = vmatpush2.msra.mxu0 %v110
    %401 = vmatprep.subr.mxu0 0.0
    %402 = vmatpush2.msra.mxu0 %v109
    %403 = vmatprep.subr.mxu0 0.0
    %404 = vmatpush2.msra.mxu0 %v108
    %405 = vmatprep.subr.mxu0 0.0
    %406 = vmatpush2.msra.mxu0 %v107
    %407 = vmatprep.subr.mxu0 0.0
    %408 = vmatpush2.msra.mxu0 %v106
    %409 = vmatprep.mubr.f32.mxu0 %v195
    %410 = vmatmul.mubr.f32.gmra.mxu0 %v187
    %v411 = vpop.f32.mrf.mxu0
    %v412 = vadd.f32 %v342, %v411
    %v413 = vpop.f32.mrf.mxu0
    %414 = vdwg.mxu0
    %415 = vmatprep.subr.mxu0 0.0
    %416 = vmatpush1.msra.mxu0 %v137
    %417 = vmatprep.subr.mxu0 0.0
    %418 = vmatpush1.msra.mxu0 %v136
    %419 = vmatprep.subr.mxu0 0.0
    %420 = vmatpush1.msra.mxu0 %v135
    %421 = vmatprep.subr.mxu0 0.0
    %422 = vmatpush1.msra.mxu0 %v134
    %423 = vmatprep.subr.mxu0 0.0
    %424 = vmatpush1.msra.mxu0 %v133
    %425 = vmatprep.subr.mxu0 0.0
    %426 = vmatpush1.msra.mxu0 %v132
    %427 = vmatprep.subr.mxu0 0.0
    %428 = vmatpush1.msra.mxu0 %v131
    %429 = vmatprep.subr.mxu0 0.0
    %430 = vmatpush1.msra.mxu0 %v130
    %431 = vmatprep.subr.mxu0 0.0
    %432 = vmatpush1.msra.mxu0 %v129
    %433 = vmatprep.subr.mxu0 0.0
    %434 = vmatpush1.msra.mxu0 %v128
    %435 = vmatprep.subr.mxu0 0.0
    %436 = vmatpush1.msra.mxu0 %v127
    %437 = vmatprep.subr.mxu0 0.0
    %438 = vmatpush1.msra.mxu0 %v126
    %439 = vmatprep.subr.mxu0 0.0
    %440 = vmatpush1.msra.mxu0 %v125
    %441 = vmatprep.subr.mxu0 0.0
    %442 = vmatpush1.msra.mxu0 %v124
    %443 = vmatprep.subr.mxu0 0.0
    %444 = vmatpush1.msra.mxu0 %v123
    %445 = vmatprep.subr.mxu0 0.0
    %446 = vmatpush1.msra.mxu0 %v122
    %447 = vmatprep.subr.mxu0 0.0
    %448 = vmatpush2.msra.mxu0 %v153
    %449 = vmatprep.subr.mxu0 0.0
    %450 = vmatpush2.msra.mxu0 %v152
    %451 = vmatprep.subr.mxu0 0.0
    %452 = vmatpush2.msra.mxu0 %v151
    %453 = vmatprep.subr.mxu0 0.0
    %454 = vmatpush2.msra.mxu0 %v150
    %455 = vmatprep.subr.mxu0 0.0
    %456 = vmatpush2.msra.mxu0 %v149
    %457 = vmatprep.subr.mxu0 0.0
    %458 = vmatpush2.msra.mxu0 %v148
    %459 = vmatprep.subr.mxu0 0.0
    %460 = vmatpush2.msra.mxu0 %v147
    %461 = vmatprep.subr.mxu0 0.0
    %462 = vmatpush2.msra.mxu0 %v146
    %463 = vmatprep.subr.mxu0 0.0
    %464 = vmatpush2.msra.mxu0 %v145
    %465 = vmatprep.subr.mxu0 0.0
    %466 = vmatpush2.msra.mxu0 %v144
    %467 = vmatprep.subr.mxu0 0.0
    %468 = vmatpush2.msra.mxu0 %v143
    %469 = vmatprep.subr.mxu0 0.0
    %470 = vmatpush2.msra.mxu0 %v142
    %471 = vmatprep.subr.mxu0 0.0
    %472 = vmatpush2.msra.mxu0 %v141
    %473 = vmatprep.subr.mxu0 0.0
    %474 = vmatpush2.msra.mxu0 %v140
    %475 = vmatprep.subr.mxu0 0.0
    %476 = vmatpush2.msra.mxu0 %v139
    %477 = vmatprep.subr.mxu0 0.0
    %478 = vmatpush2.msra.mxu0 %v138
    %479 = vmatprep.mubr.f32.mxu0 %v196
    %480 = vmatmul.mubr.f32.gmra.mxu0 %v194
    %v481 = vpop.f32.mrf.mxu0
    %v482 = vadd.f32 %v412, %v481
    %v483 = vpop.f32.mrf.mxu0
    %484 = vdwg.mxu0
    %v485 = vmax.f32 %v482, 0.0
    %v486 = vld [vmem:[%s3] sm:$0xff]
    %v487 = vld [vmem:[%s3 + $0x8] sm:$0xff]
    %v488 = vld [vmem:[%s3 + $0x10] sm:$0xff]
    %v489 = vld [vmem:[%s3 + $0x18] sm:$0xff]
    %v490 = vld [vmem:[%s4] sm:$0x1]
    %v492 = vlaneseq
    %v493 = vshrl.u32 %v492, 7
    %v494 = vsub.s32 0, %v493
    %v495 = vrot.slane %v490, %v494
    %vm497 = vcmask 261120
    %v499 = vsel %vm497, %v485, 0
    %501 = vmatprep.subr.mxu0 0.0
    %502 = vmatpush1.msra.mxu0 0.0
    %503 = vmatprep.subr.mxu0 0.0
    %504 = vmatpush1.msra.mxu0 0.0
    %505 = vmatprep.subr.mxu0 0.0
    %506 = vmatpush1.msra.mxu0 0.0
    %507 = vmatprep.subr.mxu0 0.0
    %508 = vmatpush1.msra.mxu0 0.0
    %509 = vmatprep.subr.mxu0 0.0
    %510 = vmatpush1.msra.mxu0 0.0
    %511 = vmatprep.subr.mxu0 0.0
    %512 = vmatpush1.msra.mxu0 0.0
    %513 = vmatprep.subr.mxu0 0.0
    %514 = vmatpush1.msra.mxu0 0.0
    %515 = vmatprep.subr.mxu0 0.0
    %516 = vmatpush1.msra.mxu0 0.0
    %517 = vmatprep.subr.mxu0 0.0
    %518 = vmatpush1.msra.mxu0 0.0
    %519 = vmatprep.subr.mxu0 0.0
    %520 = vmatpush1.msra.mxu0 0.0
    %521 = vmatprep.subr.mxu0 0.0
    %522 = vmatpush1.msra.mxu0 0.0
    %523 = vmatprep.subr.mxu0 0.0
    %524 = vmatpush1.msra.mxu0 0.0
    %525 = vmatprep.subr.mxu0 0.0
    %526 = vmatpush1.msra.mxu0 %v489
    %527 = vmatprep.subr.mxu0 0.0
    %528 = vmatpush1.msra.mxu0 %v488
    %529 = vmatprep.subr.mxu0 0.0
    %530 = vmatpush1.msra.mxu0 %v487
    %531 = vmatprep.subr.mxu0 0.0
    %532 = vmatpush1.msra.mxu0 %v486
    %533 = vmatprep.subr.mxu0 0.0
    %534 = vmatpush2.msra.mxu0 0.0
    %535 = vmatprep.subr.mxu0 0.0
    %536 = vmatpush2.msra.mxu0 0.0
    %537 = vmatprep.subr.mxu0 0.0
    %538 = vmatpush2.msra.mxu0 0.0
    %539 = vmatprep.subr.mxu0 0.0
    %540 = vmatpush2.msra.mxu0 0.0
    %541 = vmatprep.subr.mxu0 0.0
    %542 = vmatpush2.msra.mxu0 0.0
    %543 = vmatprep.subr.mxu0 0.0
    %544 = vmatpush2.msra.mxu0 0.0
    %545 = vmatprep.subr.mxu0 0.0
    %546 = vmatpush2.msra.mxu0 0.0
    %547 = vmatprep.subr.mxu0 0.0
    %548 = vmatpush2.msra.mxu0 0.0
    %549 = vmatprep.subr.mxu0 0.0
    %550 = vmatpush2.msra.mxu0 0.0
    %551 = vmatprep.subr.mxu0 0.0
    %552 = vmatpush2.msra.mxu0 0.0
    %553 = vmatprep.subr.mxu0 0.0
    %554 = vmatpush2.msra.mxu0 0.0
    %555 = vmatprep.subr.mxu0 0.0
    %556 = vmatpush2.msra.mxu0 0.0
    %557 = vmatprep.subr.mxu0 0.0
    %558 = vmatpush2.msra.mxu0 0.0
    %559 = vmatprep.subr.mxu0 0.0
    %560 = vmatpush2.msra.mxu0 0.0
    %561 = vmatprep.subr.mxu0 0.0
    %562 = vmatpush2.msra.mxu0 0.0
    %563 = vmatprep.subr.mxu0 0.0
    %564 = vmatpush2.msra.mxu0 0.0
    %565 = vmatprep.mubr.f32.mxu0 0.0
    %566 = vmatmul.mubr.f32.gmra.mxu0 %v499
    %v567 = vpop.f32.mrf.mxu0
    %v568 = vadd.f32 %v495, %v567
    %v569 = vpop.f32.mrf.mxu0
    %570 = vdwg.mxu0
    %v571 = vld [vmem:[%s5] sm:$0x3]
    %v572 = vsub.f32 %v568, %v571
    %v573 = vmul.f32 %v572, %v572
    %vm574 = vcmask 58368
    %v575 = vsel %vm574, %v573, 0.0
    %576 = vadd.xlane.f32.xlu0 %v575
    %v577 = vpop.xlane.xlu0 %576
    %v578 = vrot.slane %v577, 4
    %v579 = vadd.f32 %v577, %v578
    %v580 = vrot.slane %v579, 2
    %v581 = vadd.f32 %v579, %v580
    %v582 = vrot.slane %v581, 1
    %v583 = vadd.f32 %v581, %v582
    %s584 = vtos %v583
    %v585 = vstv %s584
    %v586 = vmul.f32 %v585, 0.0625
    %vm587 = vcmask 0
    %588 = vst.msk [vmem:[#allocation2] sm:$0x1] %vm587, %v586
    // Predicated region
    $region26: #{_forward_loss.1} parent=1 // pred_check
      _
    $region27: #{_forward_loss.1} parent=1 // pred_check_branch
      %590 = sbr.rel (0) target = $region29
    $region28: #{_forward_loss.1} parent=1 // pred_region
      %s592 = ssub.s32 16, 16
      %593 = vsyncadd [#allocation3], %s592
      %s595 = sshll.u32 [#allocation2], 4
      %s596 = int_to_ptr.vmem [resolvable:$true] %s595
      %598 = dma.vmem_to_hbm [thread:$0]  %s596, 16, %s6, [#allocation3]
    $region29: #{_forward_loss.1} parent=1 // pred_fallthru
      _
    // Predicated region
    $region30: #{_forward_loss.1} parent=1 // pred_check
      _
    $region31: #{_forward_loss.1} parent=1 // pred_check_branch
      %600 = sbr.rel (0) target = $region33
    $region32: #{_forward_loss.1} parent=1 // pred_region
      %601 = dma.done [#allocation3], 16
    $region33: #{_forward_loss.1} parent=1 // pred_fallthru
      _
    %602 = vsyncpa [#allocation3], 1

</llo_original>
